<compile_context>
chip_gen: v7x
topology: tpu7x:2x2x1
jax: 0.10.0
libtpu: 0.0.40
codegen_flags: <defaults>
</compile_context>

<pallas_src>
import jax
import jax.numpy as jnp
from jax import lax
from jax.experimental import pallas as pl
from jax.experimental.pallas import tpu as pltpu

_LANE = 128


def _round_up(a, b):
    return (a + b - 1) // b * b


def _lowest(dtype):
    # Dtype-aware "lowest value" (neutral element for max).
    if jnp.issubdtype(dtype, jnp.floating):
        return float("-inf")
    return int(jnp.iinfo(dtype).min)


def _make_pool_kernel(c_tile, thw, hw, n_s, dtype):
    """Builds the global-max-pool kernel for static (c_tile, thw, hw, n_s)."""
    neg = _lowest(dtype)
    n_chunks_full = thw // _LANE                 # 128-lane chunks in a full tile
    rem = hw - (n_s - 1) * thw                   # valid lanes in the last tile
    n_chunks_last = rem // _LANE                 # fully-valid chunks, last tile
    tail = rem % _LANE                           # valid lanes in the partial chunk

    def kernel(x_ref, o_ref, max_sc):
        # x_ref:  (1, c_tile, thw)  spatial tile of one (batch, channel-slab)
        # o_ref:  (1, c_tile, 1)    pooled max, written only on the last s step
        # max_sc: (c_tile, 128)     running per-lane max, persists across s
        s = pl.program_id(2)

        @pl.when(s == 0)
        def _init():
            max_sc[...] = jnp.full(max_sc.shape, neg, dtype=max_sc.dtype)

        def fold(run, n_chunks):
            # Elementwise (VPU) max over aligned 128-lane chunks; keeps the
            # XLU out of the hot loop.  fori_loop (unrolled) keeps code size
            # and vreg pressure flat as the byte-budgeted tile grows.
            if n_chunks == 0:
                return run
            if n_chunks <= 8:
                for k in range(n_chunks):
                    run = jnp.maximum(run, x_ref[0, :, k * _LANE:(k + 1) * _LANE])
                return run

            def body(k, r):
                off = pl.multiple_of(k * _LANE, _LANE)
                return jnp.maximum(r, x_ref[0, :, pl.ds(off, _LANE)])

            return lax.fori_loop(0, n_chunks, body, run, unroll=8)

        @pl.when(s < n_s - 1)
        def _full_tile():
            max_sc[...] = fold(max_sc[...], n_chunks_full)

        @pl.when(s == n_s - 1)
        def _last_tile():
            run = fold(max_sc[...], n_chunks_last)
            if tail > 0:
                # Ragged spatial tail: the last block overruns H*W.  Mask the
                # out-of-bounds lanes of the single partial chunk with the
                # dtype's lowest value instead of padding x on the host.
                chunk = x_ref[0, :, n_chunks_last * _LANE:(n_chunks_last + 1) * _LANE]
                lane = lax.broadcasted_iota(jnp.int32, chunk.shape, 1)
                chunk = jnp.where(lane < tail, chunk, jnp.full_like(chunk, neg))
                run = jnp.maximum(run, chunk)
            pooled = jnp.max(run, axis=-1, keepdims=True)       # (c_tile, 1), XLU
            o_ref[...] = pooled[None].astype(o_ref.dtype)       # (1, c_tile, 1)

    return kernel


def _max_pool_hw(x_flat, *, block_bytes=None):
    """Global max over the last (spatial) axis of (B, C, HW) via Pallas."""
    B, C, hw = x_flat.shape
    dtype = x_flat.dtype
    itemsize = jnp.dtype(dtype).itemsize

    # --- generation-aware byte budget for one x block ---------------------
    vmem_cap = 64 << 20                       # conservative fallback (v7x size)
    try:
        vmem_cap = int(pltpu.get_tpu_info().vmem_capacity_bytes)
    except Exception:
        pass
    if block_bytes is None:
        # ~16 MiB on v5e/v6e (128 MiB VMEM), ~10 MiB on v7x (64 MiB VMEM);
        # double-buffered this leaves comfortable headroom in VMEM.
        block_bytes = min(16 << 20, vmem_cap // 6)

    # --- optional channel split so both v7x TensorCores stay busy ---------
    # Only when batch alone can't give 2-way parallelism and the per-batch
    # stream is big enough that halving C doesn't shrink the blocks.
    c_tile = C
    if B % 2 == 1 and C % 16 == 0 and C * hw * itemsize >= 2 * block_bytes:
        c_tile = C // 2
    n_c = C // c_tile

    # --- spatial tile: byte-budgeted, multiple of 128 lanes ----------------
    thw = max(_LANE, (block_bytes // (c_tile * itemsize)) // _LANE * _LANE)
    thw = min(thw, _round_up(hw, _LANE))
    n_s = pl.cdiv(hw, thw)

    block_b = c_tile * thw * itemsize
    vmem_limit = int(min(int(vmem_cap * 0.9), 2 * block_b + (8 << 20)))

    kernel = _make_pool_kernel(c_tile, thw, hw, n_s, dtype)

    cost = pl.CostEstimate(
        flops=int(B * C * hw),                 # the VPU max folds (cheap)
        transcendentals=0,
        bytes_accessed=int(B * C * hw * itemsize + B * C * itemsize))

    pooled = pl.pallas_call(
        kernel,
        out_shape=jax.ShapeDtypeStruct((B, C, 1), dtype),
        grid_spec=pltpu.PrefetchScalarGridSpec(
            num_scalar_prefetch=0,
            grid=(B, n_c, n_s),
            in_specs=[
                # Streamed activation tiles, pipelined along the spatial axis.
                pl.BlockSpec((1, c_tile, thw), lambda b, c, s: (b, c, s)),
            ],
            # Output block constant along the spatial (reduction) axis:
            # accumulator pattern, written only on the last spatial step.
            out_specs=pl.BlockSpec((1, c_tile, 1), lambda b, c, s: (b, c, 0)),
            scratch_shapes=[pltpu.VMEM((c_tile, _LANE), dtype)],
        ),
        compiler_params=pltpu.CompilerParams(
            dimension_semantics=("parallel", "parallel", "arbitrary"),
            vmem_limit_bytes=vmem_limit),
        cost_estimate=cost,
    )(x_flat)
    return pooled[..., 0]                      # (B, C)


def channel_attention(x_nchw, w_fc1, w_fc2, *, block_bytes=None):
    """x_nchw: (B, C, H, W); w_fc1: (C//16, C); w_fc2: (C, C//16).

    Returns sigmoid(fc2(relu(fc1(maxpool(x))))) with shape (B, C, 1, 1).
    """
    B, C, H, W = x_nchw.shape
    hidden = w_fc1.shape[0]
    assert w_fc1.shape == (hidden, C)
    assert w_fc2.shape == (C, hidden)

    x_flat = x_nchw.reshape(B, C, H * W)
    pooled = _max_pool_hw(x_flat, block_bytes=block_bytes)        # (B, C)

    # The two bias-free 1x1 convs are tiny (B x C x C/16) matmuls on the
    # pooled vector: run them in plain XLA (no MXU finalize bubble in-kernel),
    # with the weight casts hoisted out of any loop.
    pooled_f32 = pooled.astype(jnp.float32)
    w1 = w_fc1.astype(jnp.float32)
    w2 = w_fc2.astype(jnp.float32)
    h = jnp.maximum(pooled_f32 @ w1.T, 0.0)                       # (B, hidden)
    out = jax.nn.sigmoid(h @ w2.T)                                # (B, C)
    return out.astype(x_nchw.dtype).reshape(B, C, 1, 1)


def init_params(key, in_planes):
    """Deterministic Kaiming-normal (fan_in, relu) init; convs have no bias."""
    hidden = in_planes // 16
    k1, k2 = jax.random.split(key)
    std1 = (2.0 / in_planes) ** 0.5
    w_fc1 = std1 * jax.random.normal(k1, (hidden, in_planes), dtype=jnp.float32)
    std2 = (2.0 / hidden) ** 0.5
    w_fc2 = std2 * jax.random.normal(k2, (in_planes, hidden), dtype=jnp.float32)
    return w_fc1, w_fc2


def _reference(x_nchw, w_fc1, w_fc2):
    # Pure-JAX reference for sanity checking.
    pooled = jnp.max(x_nchw, axis=(2, 3))                 # (B, C)
    h = jnp.maximum(pooled @ w_fc1.T, 0.0)                # (B, hidden)
    out = jax.nn.sigmoid(h @ w_fc2.T)                     # (B, C)
    return out[:, :, None, None]


if __name__ == "__main__":
    key = jax.random.PRNGKey(0)

    cases = [
        # (B, C, H, W, block_bytes)
        (2, 32, 16, 16, None),        # single tile, no ragged tail
        (2, 32, 17, 15, None),        # ragged tail -> in-kernel mask path
        (1, 64, 33, 20, 64 * 1024),   # forced small tile -> multi-tile stream
                                      # + odd batch -> channel-split grid axis
    ]
    for i, (B, C, H, W, bb) in enumerate(cases):
        kx, kp, key = jax.random.split(key, 3)
        x = jax.random.normal(kx, (B, C, H, W), dtype=jnp.float32)
        w_fc1, w_fc2 = init_params(kp, C)

        out = channel_attention(x, w_fc1, w_fc2, block_bytes=bb)
        out = jax.block_until_ready(out)

        ref = _reference(x, w_fc1, w_fc2)
        assert out.shape == (B, C, 1, 1), f"case {i}: bad shape {out.shape}"
        assert jnp.allclose(out, ref, atol=1e-5, rtol=1e-5), f"case {i}: mismatch"

    print("KERNEL_OK")
</pallas_src>

<mosaic_0001>
module attributes {stable_mosaic.version = 11 : i64} {
  func.func @kernel(%arg0: i32, %arg1: i32, %arg2: i32, %arg3: memref<1x32x256xf32, #tpu.memory_space<vmem>>, %arg4: memref<1x32x1xf32, #tpu.memory_space<vmem>>, %arg5: memref<32x128xf32, #tpu.memory_space<vmem>>) attributes {dimension_semantics = [#tpu.dimension_semantics<parallel>, #tpu.dimension_semantics<parallel>, #tpu.dimension_semantics<arbitrary>], iteration_bounds = array<i64: 2, 1, 1>, scalar_prefetch = 0 : i64, scratch_operands = 1 : i64, tpu.core_type = #tpu.core_type<tc>, window_params = [{transform_indices = @transform_0, window_bounds = array<i64: 1, 32, 256>}, {transform_indices = @transform_1, window_bounds = array<i64: 1, 32, 1>}]} {
    %c0_i32 = arith.constant 0 : i32
    %0 = arith.cmpi eq, %arg2, %c0_i32 : i32
    %1 = arith.extui %0 : i1 to i32
    %c0_i32_0 = arith.constant 0 : i32
    %2 = arith.cmpi ne, %1, %c0_i32_0 : i32
    scf.if %2 {
      %cst = arith.constant 0xFF800000 : f32
      %9 = vector.broadcast %cst : f32 to vector<32x128xf32>
      %c0 = arith.constant 0 : index
      %c0_5 = arith.constant 0 : index
      %10 = vector.load %arg5[%c0, %c0_5] : memref<32x128xf32, #tpu.memory_space<vmem>>, vector<32x128xf32>
      tpu.vector_store %arg5[%c0, %c0_5], %9 {strides = array<i32>} : memref<32x128xf32, #tpu.memory_space<vmem>>, vector<32x128xf32>,
    } else {
    }
    %c0_i32_1 = arith.constant 0 : i32
    %3 = arith.cmpi slt, %arg2, %c0_i32_1 : i32
    %4 = arith.extui %3 : i1 to i32
    %c0_i32_2 = arith.constant 0 : i32
    %5 = arith.cmpi ne, %4, %c0_i32_2 : i32
    scf.if %5 {
      %c0 = arith.constant 0 : index
      %c0_5 = arith.constant 0 : index
      %9 = vector.load %arg5[%c0, %c0_5] : memref<32x128xf32, #tpu.memory_space<vmem>>, vector<32x128xf32>
      %c0_6 = arith.constant 0 : index
      %c0_7 = arith.constant 0 : index
      %c0_8 = arith.constant 0 : index
      %10 = vector.load %arg3[%c0_6, %c0_7, %c0_8] : memref<1x32x256xf32, #tpu.memory_space<vmem>>, vector<1x32x128xf32>
      %11 = vector.shape_cast %10 : vector<1x32x128xf32> to vector<32x128xf32>
      %12 = arith.maximumf %9, %11 : vector<32x128xf32>
      %c0_9 = arith.constant 0 : index
      %c0_10 = arith.constant 0 : index
      %c128 = arith.constant 128 : index
      %13 = vector.load %arg3[%c0_9, %c0_10, %c128] : memref<1x32x256xf32, #tpu.memory_space<vmem>>, vector<1x32x128xf32>
      %14 = vector.shape_cast %13 : vector<1x32x128xf32> to vector<32x128xf32>
      %15 = arith.maximumf %12, %14 : vector<32x128xf32>
      %c0_11 = arith.constant 0 : index
      %c0_12 = arith.constant 0 : index
      %16 = vector.load %arg5[%c0_11, %c0_12] : memref<32x128xf32, #tpu.memory_space<vmem>>, vector<32x128xf32>
      tpu.vector_store %arg5[%c0_11, %c0_12], %15 {strides = array<i32>} : memref<32x128xf32, #tpu.memory_space<vmem>>, vector<32x128xf32>,
    } else {
    }
    %c0_i32_3 = arith.constant 0 : i32
    %6 = arith.cmpi eq, %arg2, %c0_i32_3 : i32
    %7 = arith.extui %6 : i1 to i32
    %c0_i32_4 = arith.constant 0 : i32
    %8 = arith.cmpi ne, %7, %c0_i32_4 : i32
    scf.if %8 {
      %c0 = arith.constant 0 : index
      %c0_5 = arith.constant 0 : index
      %9 = vector.load %arg5[%c0, %c0_5] : memref<32x128xf32, #tpu.memory_space<vmem>>, vector<32x128xf32>
      %c0_6 = arith.constant 0 : index
      %c0_7 = arith.constant 0 : index
      %c0_8 = arith.constant 0 : index
      %10 = vector.load %arg3[%c0_6, %c0_7, %c0_8] : memref<1x32x256xf32, #tpu.memory_space<vmem>>, vector<1x32x128xf32>
      %11 = vector.shape_cast %10 : vector<1x32x128xf32> to vector<32x128xf32>
      %12 = arith.maximumf %9, %11 : vector<32x128xf32>
      %c0_9 = arith.constant 0 : index
      %c0_10 = arith.constant 0 : index
      %c128 = arith.constant 128 : index
      %13 = vector.load %arg3[%c0_9, %c0_10, %c128] : memref<1x32x256xf32, #tpu.memory_space<vmem>>, vector<1x32x128xf32>
      %14 = vector.shape_cast %13 : vector<1x32x128xf32> to vector<32x128xf32>
      %15 = arith.maximumf %12, %14 : vector<32x128xf32>
      %cst = arith.constant dense<0xFF800000> : vector<32xf32>
      %16 = vector.multi_reduction <maximumf>, %15, %cst [1] : vector<32x128xf32> to vector<32xf32>
      %17 = vector.shape_cast %16 : vector<32xf32> to vector<32x1xf32>
      %18 = vector.shape_cast %17 : vector<32x1xf32> to vector<1x32x1xf32>
      %c0_11 = arith.constant 0 : index
      %c0_12 = arith.constant 0 : index
      %c0_13 = arith.constant 0 : index
      %19 = vector.load %arg4[%c0_11, %c0_12, %c0_13] : memref<1x32x1xf32, #tpu.memory_space<vmem>>, vector<1x32x1xf32>
      tpu.vector_store %arg4[%c0_11, %c0_12, %c0_13], %18 {strides = array<i32>} : memref<1x32x1xf32, #tpu.memory_space<vmem>>, vector<1x32x1xf32>,
    } else {
    }
    return
  }
  func.func @transform_0(%arg0: i32, %arg1: i32, %arg2: i32) -> (i32, i32, i32) {
    %c0_i32 = arith.constant 0 : i32
    return %arg0, %arg1, %arg2 : i32, i32, i32
  }
  func.func @transform_1(%arg0: i32, %arg1: i32, %arg2: i32) -> (i32, i32, i32) {
    %c0_i32 = arith.constant 0 : i32
    %c0_i32_0 = arith.constant 0 : i32
    return %arg0, %arg1, %c0_i32 : i32, i32, i32
  }
}

</mosaic_0001>

<llo_original>
// kernel: tpu_custom_call.1
$region0: #{tpu_custom_call.1}
  #allocation0 [shape = 'u32[]', space=smem, size = 0x4, offset = 0x4, fixed_abs, tag = 'smem constant byte address 0x4 - core index']
  #allocation1 [shape = 'u32[144,128]{1,0:T(1,128)}', space=vmem, size = 0x12000, scoped, tag = 'internal scratch']
  #allocation2 [shape = 'f32[32,128]{1,0:T(8,128)}', space=vmem, size = 0x4000, scoped, tag = 'scratch operand']
  %s0 = inlined_call_operand.hbm [shape: f32[2,32,256], index: 0, kind: input, shape index: {}]
  %s1 = inlined_call_operand.vmem [shape: f32[2,32,1], index: 1, kind: output, shape index: {}]
  %s2 = sld [smem:[#allocation0]]
  $region53: #{tpu_custom_call.1} parent=0
    _
  %s4 = ssub.s32 1, %s2
  %s5 = scalar_select 0, %s4, %s2
  $region1: #{tpu_custom_call.1} parent=0
    #allocation3 [shape = 'u8[65536]{0}', space=vmem, size = 0x10000, scoped, tag = 'input window, operand 0']
    #allocation4 [shape = 's32[2]{0}', space=sflag, size = 0x8, scoped, tag = 'scoped memory for tpu_custom_call.1']
    %6 = vsyncpa [#allocation4], 0
    %s7 = scalar_lea.sflag [#allocation4], 1
    %8 = vsyncpa %s7, 0
    loop: start=0, step=1, limit=4
    $region2: #{tpu_custom_call.1} parent=1 // loop_pre_header
      _
    $region3: #{tpu_custom_call.1} parent=1 // loop_header
      %s10 = sphi 0, %s14
      %p11 = scmp.ge.s32.totalorder %s10, 4
      %s17 = sphi 0, %s36
      %s18 = sphi 0, %s32
      %s19 = sphi 0, %s28
      %s20 = sphi 0, %s17
      %s21 = sphi 0, %s18
      %s22 = sphi 0, %s19
      %s23 = sphi 0, %s20
      %s24 = sphi 0, %s21
      %s25 = sphi 0, %s22
      %s43 = sphi 0, %s45
      %s46 = sphi 0, %s43
      %s47 = sphi 0, %s46
      %s63 = sphi 0, %s47
      %s71 = sphi 0, %s73
      %s74 = sphi 0, %s71
      %s75 = sphi 0, %s74
      %s91 = sphi 0, %s75
    $region4: #{tpu_custom_call.1} parent=1 // loop_header_branch
      %13 = sbr.rel (%p11) target = $region8
    $region5: #{tpu_custom_call.1} parent=1 // loop_body
      %s15 = ssub.s32 %s10, 1
      %s16 = ssub.s32 %s10, 2
      %s26 = sadd.s32 1, %s19
      %p27 = scmp.ge.s32.totalorder %s26, 1
      %s28 = scalar_select %p27, 0, %s26
      %s29 = sadd.s32 1, %s18
      %s30 = scalar_select %p27, %s29, %s18
      %p31 = scmp.ge.s32.totalorder %s30, 1
      %s32 = scalar_select %p31, 0, %s30
      %s33 = sadd.s32 1, %s17
      %s34 = scalar_select %p31, %s33, %s17
      %p35 = scmp.ge.s32.totalorder %s34, 2
      %s36 = scalar_select %p35, 0, %s34
      %s37 = ssub.s32 %s17, %s36
      %s38 = ssub.s32 %s18, %s32
      %s39 = sor.u32 %s37, %s38
      %s40 = ssub.s32 %s19, %s28
      %s41 = sor.u32 %s39, %s40
      %p42 = scmp.eq.s32.totalorder %s41, 0
      %s44 = sadd.s32 %s43, 1
      %s45 = scalar_select %p42, %s43, %s44
      %p48 = pneg %p42
      %p49 = scmp.eq.s32.totalorder %s10, 1
      %p50 = por %p48, %p49
      %p51 = scmp.ne.s32.totalorder %s43, %s46
      %p52 = scmp.eq.s32.totalorder %s10, 0
      %p53 = por %p51, %p52
      %p54 = scmp.ne.s32.totalorder %s43, %s46
      %p55 = scmp.eq.s32.totalorder %s15, 1
      %p56 = por %p54, %p55
      %p57 = scmp.ne.s32.totalorder %s46, %s47
      %p58 = scmp.eq.s32.totalorder %s15, 0
      %p59 = por %p57, %p58
      %p60 = scmp.ne.s32.totalorder %s46, %s47
      %p61 = scmp.eq.s32.totalorder %s16, 1
      %p62 = por %p60, %p61
      %p64 = scmp.ne.s32.totalorder %s47, %s63
      %p65 = scmp.eq.s32.totalorder %s16, 0
      %p66 = por %p64, %p65
      %s67 = ssub.s32 %s17, %s36
      %s68 = ssub.s32 %s18, %s32
      %s69 = sor.u32 %s67, %s68
      %p70 = scmp.eq.s32.totalorder %s69, 0
      %s72 = sadd.s32 %s71, 1
      %s73 = scalar_select %p70, %s71, %s72
      %p76 = pneg %p70
      %p77 = scmp.eq.s32.totalorder %s10, 1
      %p78 = por %p76, %p77
      %p79 = scmp.ne.s32.totalorder %s71, %s74
      %p80 = scmp.eq.s32.totalorder %s10, 0
      %p81 = por %p79, %p80
      %p82 = scmp.ne.s32.totalorder %s71, %s74
      %p83 = scmp.eq.s32.totalorder %s15, 1
      %p84 = por %p82, %p83
      %p85 = scmp.ne.s32.totalorder %s74, %s75
      %p86 = scmp.eq.s32.totalorder %s15, 0
      %p87 = por %p85, %p86
      %p88 = scmp.ne.s32.totalorder %s74, %s75
      %p89 = scmp.eq.s32.totalorder %s16, 1
      %p90 = por %p88, %p89
      %p92 = scmp.ne.s32.totalorder %s75, %s91
      %p93 = scmp.eq.s32.totalorder %s16, 0
      %p94 = por %p92, %p93
      %p95 = scmp.le.s32.totalorder 1, %s10
      %p96 = scmp.lt.s32.totalorder %s10, 3
      %p97 = pnand %p95, %p96
      %p98 = pneg %p97
      // Predicated region
      $region9: #{tpu_custom_call.1} parent=5 // pred_check
        _
      $region10: #{tpu_custom_call.1} parent=5 // pred_check_branch
        %100 = sbr.rel (%p97) target = $region12
      $region11: #{tpu_custom_call.1} parent=5 // pred_region
        %s101 = ssub.s32 %s10, 1
      $region12: #{tpu_custom_call.1} parent=5 // pred_fallthru
        _
      %p102 = scmp.lt.s32.totalorder %s10, 2
      // Predicated region
      $region13: #{tpu_custom_call.1} parent=5 // pred_check
        %p103 = pneg %p102
      $region14: #{tpu_custom_call.1} parent=5 // pred_check_branch
        %105 = sbr.rel (%p103) target = $region16
      $region15: #{tpu_custom_call.1} parent=5 // pred_region
        // Predicated region
        $region17: #{tpu_custom_call.1} parent=15 // pred_check
          %p106 = pneg %p53
        $region18: #{tpu_custom_call.1} parent=15 // pred_check_branch
          %108 = sbr.rel (%p106) target = $region20
        $region19: #{tpu_custom_call.1} parent=15 // pred_region
          %s109 = sand.u32 %s43, 1
          %s110 = scalar_lea.sflag [#allocation4], %s109
          %s111 = sand.u32 %s43, 1
          %s112 = smul.addr %s111, 64
          %s113 = scalar_lea.vmem [#allocation3], %s112
          %s114 = smul.u32 4, %s18
          %s115 = smul.u32 2, %s19
          %s117 = ssub.s32 1024, 1024
          %118 = vsyncadd %s110, %s117
          %s119 = smul.addr %s114, 2
          %s120 = sadd.s32 %s115, %s119
          %s121 = smul.addr %s17, 8
          %s122 = sadd.s32 %s120, %s121
          %s123 = smul.addr %s122, 128
          %s124 = scalar_lea.hbm %s0, %s123
          %s125 = sshll.u32 %s113, 4
          %s126 = int_to_ptr.vmem [resolvable:$true] %s125
          %131 = dma.hbm_to_vmem [thread:$0]  %s124, 1024, %s126, %s110, 256, 256, 16
        $region20: #{tpu_custom_call.1} parent=15 // pred_fallthru
          _
      $region16: #{tpu_custom_call.1} parent=5 // pred_fallthru
        _
      %p132 = scmp.le.s32.totalorder 1, %s10
      %p133 = scmp.lt.s32.totalorder %s10, 3
      %p134 = pnand %p132, %p133
      %p135 = pneg %p134
      // Predicated region
      $region21: #{tpu_custom_call.1} parent=5 // pred_check
        _
      $region22: #{tpu_custom_call.1} parent=5 // pred_check_branch
        %137 = sbr.rel (%p134) target = $region24
      $region23: #{tpu_custom_call.1} parent=5 // pred_region
        %s138 = ssub.s32 %s10, 1
        %s139 = sand.u32 %s46, 1
        %s140 = scalar_lea.sflag [#allocation4], %s139
        %s141 = sand.u32 %s46, 1
        %s142 = smul.addr %s141, 64
        %s143 = scalar_lea.vmem [#allocation3], %s142
        // Predicated region
        $region25: #{tpu_custom_call.1} parent=23 // pred_check
          %p144 = pneg %p59
        $region26: #{tpu_custom_call.1} parent=23 // pred_check_branch
          %146 = sbr.rel (%p144) target = $region28
        $region27: #{tpu_custom_call.1} parent=23 // pred_region
          %147 = dma.done %s140, 1024
        $region28: #{tpu_custom_call.1} parent=23 // pred_fallthru
          _
        %s148 = sand.u32 %s46, 1
        %s149 = scalar_lea.sflag [#allocation4], %s148
        %s150 = sand.u32 %s46, 1
        %s151 = smul.addr %s150, 64
        %s152 = scalar_lea.vmem [#allocation3], %s151
        %p153 = pneg %p59
        %p154 = pneg %p56
        %p155 = pneg %p87
        %p156 = pneg %p84
        %s157 = smul.u32 4, %s21
        %p158 = scmp.lt.s32.totalorder %s20, 1
        %s159 = scalar_select %p158, %s20, 1
        %p160 = scmp.lt.s32.totalorder %s157, 3
        %s161 = scalar_select %p160, %s157, 3
        %s162 = smul.addr %s159, 4
        %s163 = sadd.s32 %s161, %s162
        %s164 = smul.addr %s163, 8
        %s165 = scalar_lea.vmem %s1, %s164
        %s166 = smul.u32 4, %s21
        %s167 = smul.u32 2, %s22
        %s168 = smul.u32 4, %s21
        %p169 = scmp.lt.s32.totalorder %s20, 1
        %s170 = scalar_select %p169, %s20, 1
        %p171 = scmp.lt.s32.totalorder %s168, 3
        %s172 = scalar_select %p171, %s168, 3
        %s173 = smul.addr %s170, 4
        %s174 = sadd.s32 %s172, %s173
        %s175 = smul.addr %s174, 8
        %s176 = scalar_lea.vmem %s1, %s175
        %s177 = smul.u32 4, %s21
        %p178 = scmp.eq.s32.totalorder %s22, 0
        // Predicated region
        $region29: #{tpu_custom_call.1} parent=23 // pred_check
          %p179 = pneg %p178
        $region30: #{tpu_custom_call.1} parent=23 // pred_check_branch
          %181 = sbr.rel (%p179) target = $region32
        $region31: #{tpu_custom_call.1} parent=23 // pred_region
          %182 = vst [vmem:[#allocation2] sm:$0xff] -inf
          %183 = vst [vmem:[#allocation2 + $0x8] sm:$0xff] -inf
          %184 = vst [vmem:[#allocation2 + $0x10] sm:$0xff] -inf
          %185 = vst [vmem:[#allocation2 + $0x18] sm:$0xff] -inf
        $region32: #{tpu_custom_call.1} parent=23 // pred_fallthru
          _
        %p186 = scmp.lt.s32.totalorder %s22, 0
        // Predicated region
        $region33: #{tpu_custom_call.1} parent=23 // pred_check
          %p187 = pneg %p186
        $region34: #{tpu_custom_call.1} parent=23 // pred_check_branch
          %189 = sbr.rel (%p187) target = $region36
        $region35: #{tpu_custom_call.1} parent=23 // pred_region
          %v190 = vld [vmem:[#allocation2] sm:$0xff]
          %v191 = vld [vmem:[#allocation2 + $0x8] sm:$0xff]
          %v192 = vld [vmem:[#allocation2 + $0x10] sm:$0xff]
          %v193 = vld [vmem:[#allocation2 + $0x18] sm:$0xff]
          %v194 = vld [vmem:[%s143] sm:$0xff]
          %v195 = vld [vmem:[%s143 + $0x10] sm:$0xff]
          %v196 = vld [vmem:[%s143 + $0x20] sm:$0xff]
          %v197 = vld [vmem:[%s143 + $0x30] sm:$0xff]
          %v198 = vmax.f32 %v190, %v194
          %v199 = vmax.f32 %v191, %v195
          %v200 = vmax.f32 %v192, %v196
          %v201 = vmax.f32 %v193, %v197
          %v202 = vld [vmem:[%s143 + $0x8] sm:$0xff]
          %v203 = vld [vmem:[%s143 + $0x18] sm:$0xff]
          %v204 = vld [vmem:[%s143 + $0x28] sm:$0xff]
          %v205 = vld [vmem:[%s143 + $0x38] sm:$0xff]
          %v206 = vmax.f32 %v198, %v202
          %v207 = vmax.f32 %v199, %v203
          %v208 = vmax.f32 %v200, %v204
          %v209 = vmax.f32 %v201, %v205
          %210 = vst [vmem:[#allocation2] sm:$0xff] %v206
          %211 = vst [vmem:[#allocation2 + $0x8] sm:$0xff] %v207
          %212 = vst [vmem:[#allocation2 + $0x10] sm:$0xff] %v208
          %213 = vst [vmem:[#allocation2 + $0x18] sm:$0xff] %v209
        $region36: #{tpu_custom_call.1} parent=23 // pred_fallthru
          _
        // Predicated region
        $region37: #{tpu_custom_call.1} parent=23 // pred_check
          %p214 = pneg %p178
        $region38: #{tpu_custom_call.1} parent=23 // pred_check_branch
          %216 = sbr.rel (%p214) target = $region40
        $region39: #{tpu_custom_call.1} parent=23 // pred_region
          %v217 = vld [vmem:[#allocation2] sm:$0xff]
          %v218 = vld [vmem:[#allocation2 + $0x8] sm:$0xff]
          %v219 = vld [vmem:[#allocation2 + $0x10] sm:$0xff]
          %v220 = vld [vmem:[#allocation2 + $0x18] sm:$0xff]
          %v221 = vld [vmem:[%s143] sm:$0xff]
          %v222 = vld [vmem:[%s143 + $0x10] sm:$0xff]
          %v223 = vld [vmem:[%s143 + $0x20] sm:$0xff]
          %v224 = vld [vmem:[%s143 + $0x30] sm:$0xff]
          %v225 = vmax.f32 %v217, %v221
          %v226 = vmax.f32 %v218, %v222
          %v227 = vmax.f32 %v219, %v223
          %v228 = vmax.f32 %v220, %v224
          %v229 = vld [vmem:[%s143 + $0x8] sm:$0xff]
          %v230 = vld [vmem:[%s143 + $0x18] sm:$0xff]
          %v231 = vld [vmem:[%s143 + $0x28] sm:$0xff]
          %v232 = vld [vmem:[%s143 + $0x38] sm:$0xff]
          %v233 = vmax.f32 %v225, %v229
          %v234 = vmax.f32 %v226, %v230
          %v235 = vmax.f32 %v227, %v231
          %v236 = vmax.f32 %v228, %v232
          %237 = vmax.xlane.f32.xlu0 %v233
          %v238 = vpop.xlane.xlu0 %237
          %239 = vmax.xlane.f32.xlu0 %v234
          %v240 = vpop.xlane.xlu0 %239
          %241 = vmax.xlane.f32.xlu0 %v235
          %v242 = vpop.xlane.xlu0 %241
          %243 = vmax.xlane.f32.xlu0 %v236
          %v244 = vpop.xlane.xlu0 %243
          %vm245 = vcmask 7168
          %246 = vst.msk [vmem:[%s176] sm:$0xff] %vm245, %v238
          %247 = vst.msk [vmem:[%s176 + $0x8] sm:$0xff] %vm245, %v240
          %248 = vst.msk [vmem:[%s176 + $0x10] sm:$0xff] %vm245, %v242
          %249 = vst.msk [vmem:[%s176 + $0x18] sm:$0xff] %vm245, %v244
        $region40: #{tpu_custom_call.1} parent=23 // pred_fallthru
          _
        %s250 = smul.u32 4, %s21
        %p251 = scmp.lt.s32.totalorder %s20, 1
        %s252 = scalar_select %p251, %s20, 1
        %p253 = scmp.lt.s32.totalorder %s250, 3
        %s254 = scalar_select %p253, %s250, 3
        %s255 = smul.addr %s252, 4
        %s256 = sadd.s32 %s254, %s255
        %s257 = smul.addr %s256, 8
        %s258 = scalar_lea.vmem %s1, %s257
        // Predicated region
        $region41: #{tpu_custom_call.1} parent=23 // pred_check
          %p259 = pneg %p84
        $region42: #{tpu_custom_call.1} parent=23 // pred_check_branch
          %261 = sbr.rel (%p259) target = $region44
        $region43: #{tpu_custom_call.1} parent=23 // pred_region
          %s262 = smul.u32 4, %s21
        $region44: #{tpu_custom_call.1} parent=23 // pred_fallthru
          _
      $region24: #{tpu_custom_call.1} parent=5 // pred_fallthru
        _
      %p263 = scmp.le.s32.totalorder 2, %s10
      // Predicated region
      $region45: #{tpu_custom_call.1} parent=5 // pred_check
        %p264 = pneg %p263
      $region46: #{tpu_custom_call.1} parent=5 // pred_check_branch
        %266 = sbr.rel (%p264) target = $region48
      $region47: #{tpu_custom_call.1} parent=5 // pred_region
        %s267 = ssub.s32 %s10, 2
        // Predicated region
        $region49: #{tpu_custom_call.1} parent=47 // pred_check
          %p268 = pneg %p90
        $region50: #{tpu_custom_call.1} parent=47 // pred_check_branch
          %270 = sbr.rel (%p268) target = $region52
        $region51: #{tpu_custom_call.1} parent=47 // pred_region
          %s271 = smul.u32 4, %s24
          %p272 = scmp.lt.s32.totalorder %s23, 1
          %s273 = scalar_select %p272, %s23, 1
          %p274 = scmp.lt.s32.totalorder %s271, 3
          %s275 = scalar_select %p274, %s271, 3
          %s276 = smul.addr %s273, 4
          %s277 = sadd.s32 %s275, %s276
          %s278 = smul.addr %s277, 8
          %s279 = scalar_lea.vmem %s1, %s278
        $region52: #{tpu_custom_call.1} parent=47 // pred_fallthru
          _
      $region48: #{tpu_custom_call.1} parent=5 // pred_fallthru
        _
    $region6: #{tpu_custom_call.1} parent=1 // loop_footer
      %s14 = sadd.s32 1, %s10
    $region7: #{tpu_custom_call.1} parent=1 // loop_footer_branch
      %9 = sbr.rel target = $region3
    $region8: #{tpu_custom_call.1} parent=1 // loop_exit
      _
    %280 = vsyncpa [#allocation4], 1
    %s281 = scalar_lea.sflag [#allocation4], 1
    %282 = vsyncpa %s281, 1

</llo_original>
